<compile_context>
chip_gen: v7x
topology: tpu7x:2x2x1
jax: 0.10.0
libtpu: 0.0.40
codegen_flags: <defaults>
</compile_context>

<pallas_src>
import jax
import jax.numpy as jnp
from jax.experimental import pallas as pl
from jax.experimental.pallas import tpu as pltpu


def _round_up(n, m):
    return ((n + m - 1) // m) * m


def _mlp_kernel(x_ref, w1_ref, b1_ref, w2_ref, b2_ref, o_ref):
    # In-kernel bf16 cast of the x tile (VPU, hidden under the x DMA); keeps
    # the fc1 matmul a single MXU pass on v5e.  f32 accumulation.
    xb = x_ref[...].astype(jnp.bfloat16)
    h = jnp.dot(xb, w1_ref[...], preferred_element_type=jnp.float32)
    # bias + ReLU in f32 on the VPU (b1 is (1, H), broadcasts over the tile).
    h = jnp.maximum(h + b1_ref[...], 0.0)
    # fc2 as (1, H) contracted with (TB, H) over the last dims ("A @ B.T"):
    # result is (1, TB) -> lane-dense, so the store below is a full-width
    # unmasked vst instead of a 1-lane masked store.
    y = jax.lax.dot_general(
        w2_ref[...], h,
        dimension_numbers=(((1,), (1,)), ((), ())),
        preferred_element_type=jnp.float32,
    )
    y = y + b2_ref[0, 0]            # scalar bias from SMEM
    o_ref[...] = jax.nn.sigmoid(y)  # (1, TB) lane-dense write


def sentiment_forward(x, w1, b1, w2, b2, *, block_b=8192):
    """x: [B, D] float32 -> [B, 1] float32 == sigmoid(relu(x@W1+b1)@W2+b2)."""
    B, D = x.shape
    H = w1.shape[1]

    block_b = max(8, (block_b // 8) * 8)  # sublane-aligned tile size

    if B <= block_b:
        # Single exact block: block dims equal the full array dims, so no
        # 8-divisibility constraint, no padding, no partial reads.
        TB, G = B, 1
    else:
        TB = block_b
        G = pl.cdiv(B, TB)
        if G % 2 == 1:
            # Keep the megacore 'parallel' split over the batch axis balanced
            # (even number of grid steps) on multi-TC chips.
            G += 1
            TB = _round_up(pl.cdiv(B, G), 8)
            G = pl.cdiv(B, TB)

    # Only the small weight (32x8) is pre-cast to bf16; x stays f32 in HBM.
    w1_bf = w1.astype(jnp.bfloat16)
    b1_row = jnp.asarray(b1, jnp.float32).reshape(1, H)
    w2_row = jnp.asarray(w2, jnp.float32).reshape(1, H)   # (H,1) -> (1,H)
    b2_s = jnp.asarray(b2, jnp.float32).reshape(1, 1)

    out = pl.pallas_call(
        _mlp_kernel,
        out_shape=jax.ShapeDtypeStruct((G, 1, TB), jnp.float32),
        grid_spec=pltpu.PrefetchScalarGridSpec(
            num_scalar_prefetch=0,
            grid=(G,),
            in_specs=[
                pl.BlockSpec((TB, D), lambda i: (i, 0)),   # x tile (pipelined)
                pl.BlockSpec((D, H), lambda i: (0, 0)),    # W1 (VMEM resident)
                pl.BlockSpec((1, H), lambda i: (0, 0)),    # b1
                pl.BlockSpec((1, H), lambda i: (0, 0)),    # W2 row
                pl.BlockSpec(memory_space=pltpu.MemorySpace.SMEM),  # b2 scalar
            ],
            out_specs=pl.BlockSpec((None, 1, TB), lambda i: (i, 0, 0)),
        ),
        compiler_params=pltpu.CompilerParams(
            dimension_semantics=("parallel",),
            vmem_limit_bytes=32 * 1024 * 1024,
        ),
    )(x.astype(jnp.float32), w1_bf, b1_row, w2_row, b2_s)

    # (G, 1, TB) lane-dense slab -> flat (G*TB) -> drop tail garbage -> [B, 1]
    return out.reshape(G * TB)[:B].reshape(B, 1)


def init_params(key, input_size, hidden=8):
    """Deterministic init mimicking nn.Linear (uniform +/- 1/sqrt(fan_in))."""
    k1, k2, k3, k4 = jax.random.split(key, 4)
    lim1 = 1.0 / jnp.sqrt(jnp.float32(input_size))
    lim2 = 1.0 / jnp.sqrt(jnp.float32(hidden))
    w1 = jax.random.uniform(k1, (input_size, hidden), jnp.float32, -lim1, lim1)
    b1 = jax.random.uniform(k2, (1, hidden), jnp.float32, -lim1, lim1)
    w2 = jax.random.uniform(k3, (hidden, 1), jnp.float32, -lim2, lim2)
    b2 = jax.random.uniform(k4, (1, 1), jnp.float32, -lim2, lim2)
    return w1, b1, w2, b2


def _reference(x, w1, b1, w2, b2):
    # Matches the kernel's math: bf16-rounded x/W1, f32 accumulation/epilogue.
    xb = x.astype(jnp.bfloat16).astype(jnp.float32)
    w1b = w1.astype(jnp.bfloat16).astype(jnp.float32)
    h = jnp.maximum(xb @ w1b + b1.reshape(1, -1), 0.0)
    return jax.nn.sigmoid(h @ w2.reshape(-1, 1) + b2.reshape(1, 1))


if __name__ == "__main__":
    key = jax.random.PRNGKey(0)
    kx, kx2, kp = jax.random.split(key, 3)

    input_size = 32    # vocabulary size from CountVectorizer (synthetic)
    w1, b1, w2, b2 = init_params(kp, input_size)

    # 1) Tiny batch of "documents" (single exact block, TB == B == 8).
    # Synthetic bag-of-words counts (non-negative ints), like X.toarray().
    x_small = jax.random.randint(kx, (8, input_size), 0, 4).astype(jnp.float32)
    out = jax.block_until_ready(sentiment_forward(x_small, w1, b1, w2, b2))
    ref = _reference(x_small, w1, b1, w2, b2)
    assert out.shape == (8, 1)
    assert jnp.allclose(out, ref, atol=1e-4, rtol=1e-4)

    # 2) Larger batch, default tile size: single big block, no pad, no cast pass.
    x_big = jax.random.randint(kx2, (2500, input_size), 0, 4).astype(jnp.float32)
    ref_big = _reference(x_big, w1, b1, w2, b2)
    out_big = jax.block_until_ready(sentiment_forward(x_big, w1, b1, w2, b2))
    assert out_big.shape == (2500, 1)
    assert jnp.allclose(out_big, ref_big, atol=1e-4, rtol=1e-4)

    # 3) Force the multi-tile pipelined path (even G, partial tail block whose
    #    garbage rows are dropped by the [:B] slice).
    out_tiled = jax.block_until_ready(
        sentiment_forward(x_big, w1, b1, w2, b2, block_b=1024))
    assert out_tiled.shape == (2500, 1)
    assert jnp.allclose(out_tiled, ref_big, atol=1e-4, rtol=1e-4)

    print("KERNEL_OK")
</pallas_src>

<mosaic_0001>
module attributes {stable_mosaic.version = 11 : i64} {
  func.func @_mlp_kernel(%arg0: i32, %arg1: memref<8x32xf32, #tpu.memory_space<vmem>>, %arg2: memref<32x8xbf16, #tpu.memory_space<vmem>>, %arg3: memref<1x8xf32, #tpu.memory_space<vmem>>, %arg4: memref<1x8xf32, #tpu.memory_space<vmem>>, %arg5: memref<1x1xf32, #tpu.memory_space<smem>>, %arg6: memref<1x1x8xf32, #tpu.memory_space<vmem>>) attributes {dimension_semantics = [#tpu.dimension_semantics<parallel>], iteration_bounds = array<i64: 1>, scalar_prefetch = 0 : i64, scratch_operands = 0 : i64, tpu.core_type = #tpu.core_type<tc>, window_params = [{transform_indices = @transform_0, window_bounds = array<i64: 8, 32>}, {pipeline_mode = #tpu.pipeline_mode<synchronous>, transform_indices = @transform_1, window_bounds = array<i64: 32, 8>}, {pipeline_mode = #tpu.pipeline_mode<synchronous>, transform_indices = @transform_2, window_bounds = array<i64: 1, 8>}, {pipeline_mode = #tpu.pipeline_mode<synchronous>, transform_indices = @transform_3, window_bounds = array<i64: 1, 8>}, {transform_indices = @transform_4, window_bounds = array<i64: 1, 1>}, {transform_indices = @transform_5, window_bounds = array<i64: 1, 1, 8>}]} {
    %c0 = arith.constant 0 : index
    %c0_0 = arith.constant 0 : index
    %0 = vector.load %arg1[%c0, %c0_0] : memref<8x32xf32, #tpu.memory_space<vmem>>, vector<8x32xf32>
    %1 = arith.truncf %0 : vector<8x32xf32> to vector<8x32xbf16>
    %c0_1 = arith.constant 0 : index
    %c0_2 = arith.constant 0 : index
    %2 = vector.load %arg2[%c0_1, %c0_2] : memref<32x8xbf16, #tpu.memory_space<vmem>>, vector<32x8xbf16>
    %cst = arith.constant dense<0.000000e+00> : vector<8x8xf32>
    %3 = tpu.matmul %1, %2, %cst {dimension_numbers = #tpu.dot_dimension_numbers<[1], [0], [0], [1], [0, 0, 1, 1], [], []>} : vector<8x32xbf16>, vector<32x8xbf16>, vector<8x8xf32> -> vector<8x8xf32>
    %c0_3 = arith.constant 0 : index
    %c0_4 = arith.constant 0 : index
    %4 = vector.load %arg3[%c0_3, %c0_4] : memref<1x8xf32, #tpu.memory_space<vmem>>, vector<1x8xf32>
    %5 = vector.broadcast %4 : vector<1x8xf32> to vector<8x8xf32>
    %6 = arith.addf %3, %5 : vector<8x8xf32>
    %cst_5 = arith.constant 0.000000e+00 : f32
    %7 = vector.broadcast %cst_5 : f32 to vector<8x8xf32>
    %8 = arith.maximumf %6, %7 : vector<8x8xf32>
    %c0_6 = arith.constant 0 : index
    %c0_7 = arith.constant 0 : index
    %9 = vector.load %arg4[%c0_6, %c0_7] : memref<1x8xf32, #tpu.memory_space<vmem>>, vector<1x8xf32>
    %cst_8 = arith.constant dense<0.000000e+00> : vector<1x8xf32>
    %10 = tpu.matmul %9, %8, %cst_8 {dimension_numbers = #tpu.dot_dimension_numbers<[1], [1], [0], [0], [0, 0, 1, 0], [], []>} : vector<1x8xf32>, vector<8x8xf32>, vector<1x8xf32> -> vector<1x8xf32>
    %c0_9 = arith.constant 0 : index
    %c0_10 = arith.constant 0 : index
    %11 = memref.load %arg5[%c0_9, %c0_10] : memref<1x1xf32, #tpu.memory_space<smem>>
    %12 = vector.broadcast %11 : f32 to vector<1x8xf32>
    %13 = arith.addf %10, %12 : vector<1x8xf32>
    %14 = arith.negf %13 : vector<1x8xf32>
    %15 = math.exp %14 : vector<1x8xf32>
    %cst_11 = arith.constant 1.000000e+00 : f32
    %16 = vector.broadcast %cst_11 : f32 to vector<1x8xf32>
    %17 = arith.addf %16, %15 : vector<1x8xf32>
    %18 = arith.divf %16, %17 : vector<1x8xf32>
    %c0_12 = arith.constant 0 : index
    %c0_13 = arith.constant 0 : index
    %c0_14 = arith.constant 0 : index
    %19 = vector.load %arg6[%c0_12, %c0_13, %c0_14] : memref<1x1x8xf32, #tpu.memory_space<vmem>>, vector<1x1x8xf32>
    %20 = vector.shape_cast %19 : vector<1x1x8xf32> to vector<1x8xf32>
    %21 = vector.shape_cast %18 : vector<1x8xf32> to vector<1x1x8xf32>
    tpu.vector_store %arg6[%c0_12, %c0_13, %c0_14], %21 {strides = array<i32>} : memref<1x1x8xf32, #tpu.memory_space<vmem>>, vector<1x1x8xf32>,
    return
  }
  func.func @transform_0(%arg0: i32) -> (i32, i32) {
    %c0_i32 = arith.constant 0 : i32
    %c0_i32_0 = arith.constant 0 : i32
    return %arg0, %c0_i32 : i32, i32
  }
  func.func @transform_1(%arg0: i32) -> (i32, i32) {
    %c0_i32 = arith.constant 0 : i32
    %c0_i32_0 = arith.constant 0 : i32
    %c0_i32_1 = arith.constant 0 : i32
    return %c0_i32, %c0_i32_0 : i32, i32
  }
  func.func @transform_2(%arg0: i32) -> (i32, i32) {
    %c0_i32 = arith.constant 0 : i32
    %c0_i32_0 = arith.constant 0 : i32
    %c0_i32_1 = arith.constant 0 : i32
    return %c0_i32, %c0_i32_0 : i32, i32
  }
  func.func @transform_3(%arg0: i32) -> (i32, i32) {
    %c0_i32 = arith.constant 0 : i32
    %c0_i32_0 = arith.constant 0 : i32
    %c0_i32_1 = arith.constant 0 : i32
    return %c0_i32, %c0_i32_0 : i32, i32
  }
  func.func @transform_4(%arg0: i32) -> (i32, i32) {
    %c0_i32 = arith.constant 0 : i32
    %c0_i32_0 = arith.constant 0 : i32
    %c0_i32_1 = arith.constant 0 : i32
    return %c0_i32, %c0_i32_0 : i32, i32
  }
  func.func @transform_5(%arg0: i32) -> (i32, i32, i32) {
    %c0_i32 = arith.constant 0 : i32
    %c0_i32_0 = arith.constant 0 : i32
    %c0_i32_1 = arith.constant 0 : i32
    return %arg0, %c0_i32, %c0_i32_0 : i32, i32, i32
  }
}

</mosaic_0001>

<llo_original>
// kernel: tpu_custom_call.1
$region0: #{tpu_custom_call.1}
  #allocation0 [shape = 'u32[]', space=smem, size = 0x4, offset = 0x4, fixed_abs, tag = 'smem constant byte address 0x4 - core index']
  #allocation1 [shape = 'u32[144,128]{1,0:T(1,128)}', space=vmem, size = 0x12000, scoped, tag = 'internal scratch']
  #allocation2 [shape = 'f32[1,1]{1,0:T(1,128)S(6)}', space=smem, size = 0x200, scoped, tag = 'scoped memory for tpu_custom_call.1']
  %s0 = inlined_call_operand.vmem [shape: f32[8,32], index: 0, kind: input, shape index: {}]
  %s1 = inlined_call_operand.vmem [shape: bf16[32,8], index: 1, kind: input, shape index: {}]
  %s2 = inlined_call_operand.vmem [shape: f32[1,8], index: 2, kind: input, shape index: {}]
  %s3 = inlined_call_operand.vmem [shape: f32[1,8], index: 3, kind: input, shape index: {}]
  %s4 = inlined_call_operand.<no memory space> [shape: f32[1,1], index: 4, kind: input, shape index: {}]
  %s5 = inlined_call_operand.hbm [shape: f32[1,1,8], index: 5, kind: output, shape index: {}]
  %s6 = sld [smem:[#allocation0]]
  $region30: #{tpu_custom_call.1} parent=0
    _
  %s8 = ssub.s32 1, %s6
  %s9 = scalar_select 0, %s8, %s6
  %10 = sst [smem:[#allocation2]] %s4
  $region1: #{tpu_custom_call.1} parent=0
    #allocation3 [shape = 'u8[512]{0}', space=vmem, size = 0x400, scoped, tag = 'output window, operand 0, single buffered']
    #allocation4 [shape = 's32[1]{0}', space=sflag, size = 0x4, scoped, tag = 'scoped memory for tpu_custom_call.1']
    %11 = vsyncpa [#allocation4], 0
    // Predicated region
    $region2: #{tpu_custom_call.1} parent=1 // pred_check
      _
    $region3: #{tpu_custom_call.1} parent=1 // pred_check_branch
      %13 = sbr.rel (0) target = $region5
    $region4: #{tpu_custom_call.1} parent=1 // pred_region
      _
    $region5: #{tpu_custom_call.1} parent=1 // pred_fallthru
      _
    // Predicated region
    $region6: #{tpu_custom_call.1} parent=1 // pred_check
      _
    $region7: #{tpu_custom_call.1} parent=1 // pred_check_branch
      %15 = sbr.rel (0) target = $region9
    $region8: #{tpu_custom_call.1} parent=1 // pred_region
      _
    $region9: #{tpu_custom_call.1} parent=1 // pred_fallthru
      _
    // Predicated region
    $region10: #{tpu_custom_call.1} parent=1 // pred_check
      _
    $region11: #{tpu_custom_call.1} parent=1 // pred_check_branch
      %17 = sbr.rel (0) target = $region13
    $region12: #{tpu_custom_call.1} parent=1 // pred_region
      _
    $region13: #{tpu_custom_call.1} parent=1 // pred_fallthru
      _
    // Predicated region
    $region14: #{tpu_custom_call.1} parent=1 // pred_check
      _
    $region15: #{tpu_custom_call.1} parent=1 // pred_check_branch
      %19 = sbr.rel (0) target = $region17
    $region16: #{tpu_custom_call.1} parent=1 // pred_region
      _
    $region17: #{tpu_custom_call.1} parent=1 // pred_fallthru
      _
    // Predicated region
    $region18: #{tpu_custom_call.1} parent=1 // pred_check
      _
    $region19: #{tpu_custom_call.1} parent=1 // pred_check_branch
      %21 = sbr.rel (0) target = $region21
    $region20: #{tpu_custom_call.1} parent=1 // pred_region
      _
    $region21: #{tpu_custom_call.1} parent=1 // pred_fallthru
      _
    %v23 = vld [vmem:[%s0] sm:$0xff]
    %v24 = vpack.c.bf16 %v23, %v23
    %v25 = vld [vmem:[%s1] sm:$0xf]
    %v26 = vld [vmem:[%s1 + $0x4] sm:$0xf]
    %v27 = vld [vmem:[%s1 + $0x8] sm:$0xf]
    %v28 = vld [vmem:[%s1 + $0xc] sm:$0xf]
    %v29 = vld [vmem:[%s2] sm:$0x1]
    %v31 = vlaneseq
    %v32 = vshrl.u32 %v31, 7
    %v33 = vsub.s32 0, %v32
    %v34 = vrot.slane %v29, %v33
    %v40 = vunpack.c.l.b16 %v25
    %v41 = vunpack.c.l.b16 %v26
    %v42 = vunpack.c.l.b16 %v27
    %v43 = vunpack.c.l.b16 %v28
    %v44 = vpack.c.b16 %v41, %v40
    %v45 = vpack.c.b16 %v43, %v42
    %vm48 = vcmask 261120
    %v50 = vsel %vm48, %v24, 0
    %52 = vmatprep.subr.bf16.mxu0 0
    %53 = vmatpush1.bf16.msra.mxu0 %v44
    %54 = vmatprep.subr.bf16.mxu0 0
    %55 = vmatpush1.bf16.msra.mxu0 %v45
    %56 = vmatprep.subr.bf16.mxu0 0
    %57 = vmatpush1.bf16.msra.mxu0 0
    %58 = vmatprep.subr.bf16.mxu0 0
    %59 = vmatpush1.bf16.msra.mxu0 0
    %60 = vmatprep.subr.bf16.mxu0 0
    %61 = vmatpush1.bf16.msra.mxu0 0
    %62 = vmatprep.subr.bf16.mxu0 0
    %63 = vmatpush1.bf16.msra.mxu0 0
    %64 = vmatprep.subr.bf16.mxu0 0
    %65 = vmatpush1.bf16.msra.mxu0 0
    %66 = vmatprep.subr.bf16.mxu0 0
    %67 = vmatpush1.bf16.msra.mxu0 0
    %68 = vmatprep.subr.bf16.mxu0 0
    %69 = vmatpush1.bf16.msra.mxu0 0
    %70 = vmatprep.subr.bf16.mxu0 0
    %71 = vmatpush1.bf16.msra.mxu0 0
    %72 = vmatprep.subr.bf16.mxu0 0
    %73 = vmatpush1.bf16.msra.mxu0 0
    %74 = vmatprep.subr.bf16.mxu0 0
    %75 = vmatpush1.bf16.msra.mxu0 0
    %76 = vmatprep.subr.bf16.mxu0 0
    %77 = vmatpush1.bf16.msra.mxu0 0
    %78 = vmatprep.subr.bf16.mxu0 0
    %79 = vmatpush1.bf16.msra.mxu0 0
    %80 = vmatprep.subr.bf16.mxu0 0
    %81 = vmatpush1.bf16.msra.mxu0 0
    %82 = vmatprep.subr.bf16.mxu0 0
    %83 = vmatpush1.bf16.msra.mxu0 0
    %84 = vmatprep.mubr.bf16.mxu0 0
    %85 = vmatmul.mubr.bf16.gmra.mrb[0].mxu0 %v50
    %v86 = vpop.f32.mrb[0].mxu0
    %v87 = vadd.f32 %v34, %v86
    %v88 = vpop.f32.mrb[0].mxu0
    %v89 = vpop.f32.mrb[0].mxu0
    %v90 = vpop.f32.mrb[0].mxu0
    %91 = vdwg.mxu0
    %v92 = vmax.f32 %v87, 0.0
    %v93 = vld [vmem:[%s3] sm:$0x1]
    %s94 = sld [smem:[#allocation2]]
    %v95 = vstv %s94
    %vm96 = vcmask 64512
    %v98 = vsel %vm96, %v93, 0
    %v101 = vsel %vm96, %v92, 0
    %103 = vmatprep.subr.mxu0 0.0
    %104 = vmatpush1.xpose.msra.mxu0 %v101
    %105 = vmatprep.subr.mxu0 0.0
    %106 = vmatpush1.xpose.msra.mxu0 0.0
    %107 = vmatprep.subr.mxu0 0.0
    %108 = vmatpush1.xpose.msra.mxu0 0.0
    %109 = vmatprep.subr.mxu0 0.0
    %110 = vmatpush1.xpose.msra.mxu0 0.0
    %111 = vmatprep.subr.mxu0 0.0
    %112 = vmatpush1.xpose.msra.mxu0 0.0
    %113 = vmatprep.subr.mxu0 0.0
    %114 = vmatpush1.xpose.msra.mxu0 0.0
    %115 = vmatprep.subr.mxu0 0.0
    %116 = vmatpush1.xpose.msra.mxu0 0.0
    %117 = vmatprep.subr.mxu0 0.0
    %118 = vmatpush1.xpose.msra.mxu0 0.0
    %119 = vmatprep.subr.mxu0 0.0
    %120 = vmatpush1.xpose.msra.mxu0 0.0
    %121 = vmatprep.subr.mxu0 0.0
    %122 = vmatpush1.xpose.msra.mxu0 0.0
    %123 = vmatprep.subr.mxu0 0.0
    %124 = vmatpush1.xpose.msra.mxu0 0.0
    %125 = vmatprep.subr.mxu0 0.0
    %126 = vmatpush1.xpose.msra.mxu0 0.0
    %127 = vmatprep.subr.mxu0 0.0
    %128 = vmatpush1.xpose.msra.mxu0 0.0
    %129 = vmatprep.subr.mxu0 0.0
    %130 = vmatpush1.xpose.msra.mxu0 0.0
    %131 = vmatprep.subr.mxu0 0.0
    %132 = vmatpush1.xpose.msra.mxu0 0.0
    %133 = vmatprep.subr.mxu0 0.0
    %134 = vmatpush1.xpose.msra.mxu0 0.0
    %135 = vmatprep.subr.mxu0 0.0
    %136 = vmatpush1.xpose.msra.mxu0 0.0
    %137 = vmatprep.subr.mxu0 0.0
    %138 = vmatpush1.xpose.msra.mxu0 0.0
    %139 = vmatprep.subr.mxu0 0.0
    %140 = vmatpush1.xpose.msra.mxu0 0.0
    %141 = vmatprep.subr.mxu0 0.0
    %142 = vmatpush1.xpose.msra.mxu0 0.0
    %143 = vmatprep.subr.mxu0 0.0
    %144 = vmatpush1.xpose.msra.mxu0 0.0
    %145 = vmatprep.subr.mxu0 0.0
    %146 = vmatpush1.xpose.msra.mxu0 0.0
    %147 = vmatprep.subr.mxu0 0.0
    %148 = vmatpush1.xpose.msra.mxu0 0.0
    %149 = vmatprep.subr.mxu0 0.0
    %150 = vmatpush1.xpose.msra.mxu0 0.0
    %151 = vmatprep.subr.mxu0 0.0
    %152 = vmatpush1.xpose.msra.mxu0 0.0
    %153 = vmatprep.subr.mxu0 0.0
    %154 = vmatpush1.xpose.msra.mxu0 0.0
    %155 = vmatprep.subr.mxu0 0.0
    %156 = vmatpush1.xpose.msra.mxu0 0.0
    %157 = vmatprep.subr.mxu0 0.0
    %158 = vmatpush1.xpose.msra.mxu0 0.0
    %159 = vmatprep.subr.mxu0 0.0
    %160 = vmatpush1.xpose.msra.mxu0 0.0
    %161 = vmatprep.subr.mxu0 0.0
    %162 = vmatpush1.xpose.msra.mxu0 0.0
    %163 = vmatprep.subr.mxu0 0.0
    %164 = vmatpush1.xpose.msra.mxu0 0.0
    %165 = vmatprep.subr.mxu0 0.0
    %166 = vmatpush1.xpose.msra.mxu0 0.0
    %167 = vmatprep.mubr.f32.mxu0 0.0
    %168 = vmatmul.mubr.f32.gmra.mrb[0].mxu0 %v98
    %v169 = vpop.f32.mrb[0].mxu0
    %v170 = vadd.f32 %v95, %v169
    %v171 = vpop.f32.mrb[0].mxu0
    %172 = vdwg.mxu0
    %v173 = vxor.u32 %v170, 2147483648
    %v174 = vmul.f32 %v173, 1.442695
    %v175 = vpow.pop %v174
    %v176 = vadd.f32 %v175, 1.0
    %v177 = vrcp.pop %v176
    %v178 = vmul.f32 1.0, %v177
    %vm179 = vcmask 57344
    %180 = vst.msk [vmem:[#allocation3] sm:$0x1] %vm179, %v178
    // Predicated region
    $region22: #{tpu_custom_call.1} parent=1 // pred_check
      _
    $region23: #{tpu_custom_call.1} parent=1 // pred_check_branch
      %182 = sbr.rel (0) target = $region25
    $region24: #{tpu_custom_call.1} parent=1 // pred_region
      %s184 = ssub.s32 16, 16
      %185 = vsyncadd [#allocation4], %s184
      %s187 = sshll.u32 [#allocation3], 4
      %s188 = int_to_ptr.vmem [resolvable:$true] %s187
      %190 = dma.vmem_to_hbm [thread:$0]  %s188, 16, %s5, [#allocation4]
    $region25: #{tpu_custom_call.1} parent=1 // pred_fallthru
      _
    // Predicated region
    $region26: #{tpu_custom_call.1} parent=1 // pred_check
      _
    $region27: #{tpu_custom_call.1} parent=1 // pred_check_branch
      %192 = sbr.rel (0) target = $region29
    $region28: #{tpu_custom_call.1} parent=1 // pred_region
      %193 = dma.done [#allocation4], 16
    $region29: #{tpu_custom_call.1} parent=1 // pred_fallthru
      _
    %194 = vsyncpa [#allocation4], 1

</llo_original>
